<compile_context>
chip_gen: v7x
topology: tpu7x:2x2x1
jax: 0.10.0
libtpu: 0.0.40
codegen_flags: <defaults>
</compile_context>

<pallas_src>
import jax
import jax.numpy as jnp
from jax.experimental import pallas as pl
from jax.experimental.pallas import tpu as pltpu


# ---------------------------------------------------------------------------
# VMEM budgeting (generation aware: v5e/v6e 128 MiB physical, v7x 64 MiB per TC)
# ---------------------------------------------------------------------------
def _vmem_limit_bytes():
    try:
        cap = int(pltpu.get_tpu_info().vmem_capacity_bytes)
    except Exception:
        cap = 64 * 1024 * 1024          # conservative (v7x-sized) fallback
    return int(min(cap * 3 // 4, 96 * 1024 * 1024))


def _sublane_multiple(itemsize):
    # sublane packing: 8 rows/vreg for 32-bit, 16 for 16-bit, 32 for 8-bit dtypes
    return {4: 8, 2: 16, 1: 32}.get(int(itemsize), 8)


def _choose_seq_tile(S, n_rope, D, act_itemsize, tbl_itemsize, vmem_limit):
    sub = _sublane_multiple(act_itemsize)
    # Bytes resident per sequence row per grid step: double-buffered input segments,
    # double-buffered cos/ssin, double-buffered outputs, plus f32 compute temporaries.
    row = (2 * (n_rope * D * act_itemsize            # input slabs
                + 2 * D * tbl_itemsize               # cos + ssin
                + n_rope * D * act_itemsize)         # output slabs
           + 4 * D * 4)                              # f32 temps (x, rot, products)
    budget = int(vmem_limit * 0.8)
    ts = min(S, 1024, max(sub, budget // max(row, 1)))
    if ts < S:                                       # keep sublane-packed output tiles
        ts = max(sub, ts - (ts % sub))
    return ts


# ---------------------------------------------------------------------------
# Fused Q/K RoPE kernel (pure lane-dense elementwise body)
# ---------------------------------------------------------------------------
def _make_rope_kernel(n_rope, half):
    def kernel(*refs):
        x_refs = refs[:n_rope]               # each [ts, D]  (one head, one segment)
        cos_ref = refs[n_rope]               # [ts, D]
        ssin_ref = refs[n_rope + 1]          # [ts, D]  (rotate_half sign pre-folded)
        out_refs = refs[n_rope + 2:]         # each [ts, D]  (block of [B, H, S, D])
        cos = cos_ref[...].astype(jnp.float32)
        ssin = ssin_ref[...].astype(jnp.float32)
        for i in range(n_rope):              # n_rope <= 2: tiny static unroll
            x = x_refs[i][...].astype(jnp.float32)
            rot = pltpu.roll(x, shift=half, axis=1)          # XLU lane rotation
            out_refs[i][...] = (x * cos + rot * ssin).astype(out_refs[i].dtype)
    return kernel


def _fused_rope_pallas(x6, cos_sel, ssin_sel, n_rope):
    """x6: [B, S, NC, H, 1, D]; cos_sel/ssin_sel: [B, S, D] (position-gathered; ssin has
    rotate_half's sign folded in).  Returns n_rope tensors of shape [B, H, S, D]."""
    B, S, NC, H, _, D = x6.shape
    assert D % 2 == 0 and 1 <= n_rope <= NC
    dtype = x6.dtype
    vmem_limit = _vmem_limit_bytes()
    ts = _choose_seq_tile(S, n_rope, D, dtype.itemsize,
                          jnp.dtype(cos_sel.dtype).itemsize, vmem_limit)
    grid = (B, pl.cdiv(S, ts), H)            # head axis innermost: cos/ssin revisit-skip

    # One input operand per RoPE'd segment (all views of the same HBM array). Each block
    # is a dense [ts, D] slab for (segment c, head h); the V segments are never touched.
    x_specs = [
        pl.BlockSpec((None, ts, None, None, None, D),
                     lambda b, s, h, c=c: (b, s, c, h, 0, 0))
        for c in range(n_rope)
    ]
    cs_spec = pl.BlockSpec((None, ts, D), lambda b, s, h: (b, s, 0))
    out_shape = tuple(jax.ShapeDtypeStruct((B, H, S, D), dtype) for _ in range(n_rope))
    # The S<->H permutation happens here, in the output index_map (DMA-side).
    out_specs = tuple(
        pl.BlockSpec((None, None, ts, D), lambda b, s, h: (b, h, s, 0))
        for _ in range(n_rope))

    outs = pl.pallas_call(
        _make_rope_kernel(n_rope, D // 2),
        out_shape=out_shape,
        grid_spec=pltpu.PrefetchScalarGridSpec(
            num_scalar_prefetch=0,
            grid=grid,
            in_specs=x_specs + [cs_spec, cs_spec],
            out_specs=out_specs),
        compiler_params=pltpu.CompilerParams(
            dimension_semantics=("parallel", "parallel", "parallel"),
            vmem_limit_bytes=vmem_limit),
    )(*([x6] * n_rope), cos_sel, ssin_sel)

    if not isinstance(outs, (list, tuple)):
        outs = (outs,)
    return tuple(outs)


# ---------------------------------------------------------------------------
# RotaryEmbedding: deterministic in-script "parameters" (sin/cos caches)
# ---------------------------------------------------------------------------
class RotaryEmbeddingJax:
    def __init__(self, max_position_embeddings, dim, backbone, base=10000):
        self.model_backbone = str(backbone)
        self.inv_freq = 1.0 / (base ** (jnp.arange(0, dim, 2, dtype=jnp.float32) / dim))
        self.max_seq_len_cached = max_position_embeddings
        self._build_cache(max_position_embeddings)

    def _build_cache(self, max_len):
        t = jnp.arange(max_len, dtype=jnp.float32)
        freqs = jnp.einsum("i,j->ij", t, self.inv_freq)
        if self.model_backbone in ("FalconForCausalLM", "RWForCausalLM"):
            self.sin_cos = jnp.concatenate(
                [jnp.tile(jnp.sin(freqs), (1, 2)), jnp.tile(jnp.cos(freqs), (1, 2))],
                axis=-1)
            emb = jnp.concatenate([freqs, freqs], axis=-1).astype(jnp.float32)
            self.cos_cached = jnp.cos(emb)[None, :, :]
            self.sin_cached = jnp.sin(emb)[None, :, :]
        else:
            self.sin_cos = jnp.concatenate([jnp.sin(freqs), jnp.cos(freqs)], axis=1)
            emb = jnp.concatenate([freqs, freqs], axis=-1)
            self.cos_cached = jnp.cos(emb)[None, None, :, :]   # [1, 1, max_pos, dim]
            self.sin_cached = jnp.sin(emb)[None, None, :, :]

    def __call__(self, seq_len=None):
        # TODO(synk): cache regrowth is Python-side mutable state; it must happen outside
        # jit-traced code (seq_len must be a Python int here).
        if seq_len is not None and seq_len > self.max_seq_len_cached:
            self.max_seq_len_cached = seq_len
            self._build_cache(seq_len)
        return self.sin_cos, self.sin_cached, self.cos_cached


# ---------------------------------------------------------------------------
# _IPEXRopeRef (Llama / Mistral / Mixtral backbone) application path
# ---------------------------------------------------------------------------
class IPEXRopeRefPallas:
    def __init__(self, max_position_embeddings, pos_embd_dim, base=10000, backbone=None):
        assert backbone in ("LlamaForCausalLM", "MistralForCausalLM",
                            "MixtralForCausalLM"), \
            "only the Llama-family RoPE path is implemented"
        self.model_backbone = backbone
        self.embed_positions = RotaryEmbeddingJax(
            max_position_embeddings, pos_embd_dim, backbone, base)

    @staticmethod
    def _table_dtype(x_dtype):
        # Halve cos/sin HBM traffic for bf16 activations; kernel math stays f32.
        return jnp.bfloat16 if x_dtype == jnp.bfloat16 else jnp.float32

    def _gathered_tables(self, position_ids, seq_len, table_dtype):
        _sin_cos, _sin, _cos = self.embed_positions(seq_len)
        cos_tbl = _cos[0, 0]                               # [max_pos, D]
        sin_tbl = _sin[0, 0]
        D = cos_tbl.shape[-1]
        half = D // 2
        cos_sel = jnp.take(cos_tbl, position_ids, axis=0)  # [B, S, D], gathered once
        sin_sel = jnp.take(sin_tbl, position_ids, axis=0)
        # Hoisted out of the kernel: fold rotate_half's sign into sin once per call.
        # x*cos + rotate_half(x)*sin == x*cos + roll(x, D/2) * ssin
        ssin_sel = jnp.concatenate([-sin_sel[..., :half], sin_sel[..., half:]], axis=-1)
        return cos_sel.astype(table_dtype), ssin_sel.astype(table_dtype)

    @staticmethod
    def _check_rope_args(head_dim, offset, rotary_ndims):
        # TODO(synk): offset / partial rotary (rotary_ndims < head_dim) are unused by the
        # Llama-family path; guard explicitly instead of silently mis-rotating.
        if rotary_ndims is not None and rotary_ndims != head_dim:
            raise NotImplementedError(
                "partial rotary (rotary_ndims < head_dim) is not supported")

    def apply_ref_rope(self, x, position_ids, num_head, head_dim, offset, rotary_ndims,
                       seq_len=None):
        self._check_rope_args(head_dim, offset, rotary_ndims)
        B, S = x.shape[0], x.shape[1]
        cos_sel, ssin_sel = self._gathered_tables(
            position_ids, seq_len, self._table_dtype(x.dtype))
        x6 = x.reshape(B, S, 1, num_head, 1, head_dim)     # free reshape
        (out,) = _fused_rope_pallas(x6, cos_sel, ssin_sel, n_rope=1)
        return out                                          # [B, H, S, D]

    def __call__(self, concat_x, position_ids, num_head, head_dim, offset, rotary_ndims,
                 seq_len=None, num_concats=None):
        if num_concats is None:
            return self.apply_ref_rope(concat_x, position_ids, num_head, head_dim,
                                       offset, rotary_ndims, seq_len)
        self._check_rope_args(head_dim, offset, rotary_ndims)
        B, S = concat_x.shape[0], concat_x.shape[1]
        hidden_size = concat_x.shape[-1] // num_concats
        # TODO(synk): equal num_concats split assumes MHA-shaped fused QKV (as in the
        # PyTorch reference); GQA with fewer K/V heads needs per-segment head counts.
        assert hidden_size == num_head * head_dim and num_concats >= 2
        cos_sel, ssin_sel = self._gathered_tables(
            position_ids, seq_len, self._table_dtype(concat_x.dtype))
        x6 = concat_x.reshape(B, S, num_concats, num_head, 1, head_dim)  # free reshape
        query, key = _fused_rope_pallas(x6, cos_sel, ssin_sel, n_rope=2)
        # V is untouched by RoPE: it is never shuttled through the kernel (saves ~1/3 of
        # HBM traffic). Downstream consumers should read it from concat_x directly.
        value = concat_x[..., 2 * hidden_size:]
        return query, key, value                            # [B,H,S,D], [B,H,S,D], [B,S,*]


# ---------------------------------------------------------------------------
# Pure-JAX reference (for correctness verification)
# ---------------------------------------------------------------------------
def _rope_llama_ref(x_bshd, cos_tbl, sin_tbl, position_ids):
    cos_sel = cos_tbl[position_ids][:, None, :, :]   # [B, 1, S, D]
    sin_sel = sin_tbl[position_ids][:, None, :, :]
    xt = jnp.transpose(x_bshd, (0, 2, 1, 3))         # [B, H, S, D]
    half = xt.shape[-1] // 2
    rot = jnp.concatenate([-xt[..., half:], xt[..., :half]], axis=-1)
    return xt * cos_sel + rot * sin_sel


if __name__ == "__main__":
    # Small synthetic Llama-style config (head_dim=128 keeps lanes dense)
    B, S, H, D = 2, 8, 4, 128
    num_concats = 3
    max_pos = 64
    hidden = H * D

    key = jax.random.PRNGKey(0)
    concat_x = jax.random.normal(key, (B, S, num_concats * hidden), dtype=jnp.float32)
    position_ids = jnp.tile(jnp.arange(S, dtype=jnp.int32)[None, :], (B, 1))

    rope = IPEXRopeRefPallas(max_position_embeddings=max_pos, pos_embd_dim=D,
                             base=10000, backbone="LlamaForCausalLM")

    q, k, v = rope(concat_x, position_ids, num_head=H, head_dim=D, offset=0,
                   rotary_ndims=D, seq_len=S, num_concats=num_concats)
    q, k, v = jax.block_until_ready((q, k, v))

    # Verify against pure-JAX reference semantics
    cos_tbl = rope.embed_positions.cos_cached[0, 0]
    sin_tbl = rope.embed_positions.sin_cached[0, 0]
    q_ref = _rope_llama_ref(concat_x[..., :hidden].reshape(B, S, H, D),
                            cos_tbl, sin_tbl, position_ids)
    k_ref = _rope_llama_ref(concat_x[..., hidden:2 * hidden].reshape(B, S, H, D),
                            cos_tbl, sin_tbl, position_ids)
    v_ref = concat_x[..., 2 * hidden:]

    assert q.shape == (B, H, S, D) and k.shape == (B, H, S, D)
    assert v.shape == v_ref.shape
    assert jnp.allclose(q, q_ref, atol=1e-5, rtol=1e-5)
    assert jnp.allclose(k, k_ref, atol=1e-5, rtol=1e-5)
    assert jnp.allclose(v, v_ref)

    # Also exercise the plain (num_concats=None) path
    q_single = rope(concat_x[..., :hidden], position_ids, num_head=H, head_dim=D,
                    offset=0, rotary_ndims=D, seq_len=S)
    q_single = jax.block_until_ready(q_single)
    assert jnp.allclose(q_single, q_ref, atol=1e-5, rtol=1e-5)

    print("KERNEL_OK")
</pallas_src>

<mosaic_0001>
module attributes {stable_mosaic.version = 11 : i64} {
  func.func @kernel(%arg0: i32, %arg1: i32, %arg2: i32, %arg3: memref<1x8x1x1x1x128xf32, #tpu.memory_space<vmem>>, %arg4: memref<1x8x1x1x1x128xf32, #tpu.memory_space<vmem>>, %arg5: memref<1x8x128xf32, #tpu.memory_space<vmem>>, %arg6: memref<1x8x128xf32, #tpu.memory_space<vmem>>, %arg7: memref<1x1x8x128xf32, #tpu.memory_space<vmem>>, %arg8: memref<1x1x8x128xf32, #tpu.memory_space<vmem>>) attributes {dimension_semantics = [#tpu.dimension_semantics<parallel>, #tpu.dimension_semantics<parallel>, #tpu.dimension_semantics<parallel>], iteration_bounds = array<i64: 2, 1, 4>, scalar_prefetch = 0 : i64, scratch_operands = 0 : i64, tpu.core_type = #tpu.core_type<tc>, window_params = [{transform_indices = @transform_0, window_bounds = array<i64: 1, 8, 1, 1, 1, 128>}, {transform_indices = @transform_1, window_bounds = array<i64: 1, 8, 1, 1, 1, 128>}, {transform_indices = @transform_2, window_bounds = array<i64: 1, 8, 128>}, {transform_indices = @transform_3, window_bounds = array<i64: 1, 8, 128>}, {transform_indices = @transform_4, window_bounds = array<i64: 1, 1, 8, 128>}, {transform_indices = @transform_5, window_bounds = array<i64: 1, 1, 8, 128>}]} {
    %c0 = arith.constant 0 : index
    %c0_0 = arith.constant 0 : index
    %c0_1 = arith.constant 0 : index
    %0 = vector.load %arg5[%c0, %c0_0, %c0_1] : memref<1x8x128xf32, #tpu.memory_space<vmem>>, vector<1x8x128xf32>
    %1 = vector.shape_cast %0 : vector<1x8x128xf32> to vector<8x128xf32>
    %c0_2 = arith.constant 0 : index
    %c0_3 = arith.constant 0 : index
    %c0_4 = arith.constant 0 : index
    %2 = vector.load %arg6[%c0_2, %c0_3, %c0_4] : memref<1x8x128xf32, #tpu.memory_space<vmem>>, vector<1x8x128xf32>
    %3 = vector.shape_cast %2 : vector<1x8x128xf32> to vector<8x128xf32>
    %c0_5 = arith.constant 0 : index
    %c0_6 = arith.constant 0 : index
    %c0_7 = arith.constant 0 : index
    %c0_8 = arith.constant 0 : index
    %c0_9 = arith.constant 0 : index
    %c0_10 = arith.constant 0 : index
    %4 = vector.load %arg3[%c0_5, %c0_6, %c0_7, %c0_8, %c0_9, %c0_10] : memref<1x8x1x1x1x128xf32, #tpu.memory_space<vmem>>, vector<1x8x1x1x1x128xf32>
    %5 = vector.shape_cast %4 : vector<1x8x1x1x1x128xf32> to vector<8x128xf32>
    %c64_i32 = arith.constant 64 : i32
    %6 = tpu.dynamic_rotate %5 by %c64_i32 dim 1 : vector<8x128xf32>, i32 -> vector<8x128xf32>
    %7 = arith.mulf %5, %1 : vector<8x128xf32>
    %8 = arith.mulf %6, %3 : vector<8x128xf32>
    %9 = arith.addf %7, %8 : vector<8x128xf32>
    %c0_11 = arith.constant 0 : index
    %c0_12 = arith.constant 0 : index
    %c0_13 = arith.constant 0 : index
    %c0_14 = arith.constant 0 : index
    %10 = vector.load %arg7[%c0_11, %c0_12, %c0_13, %c0_14] : memref<1x1x8x128xf32, #tpu.memory_space<vmem>>, vector<1x1x8x128xf32>
    %11 = vector.shape_cast %10 : vector<1x1x8x128xf32> to vector<8x128xf32>
    %12 = vector.shape_cast %9 : vector<8x128xf32> to vector<1x1x8x128xf32>
    tpu.vector_store %arg7[%c0_11, %c0_12, %c0_13, %c0_14], %12 {strides = array<i32>} : memref<1x1x8x128xf32, #tpu.memory_space<vmem>>, vector<1x1x8x128xf32>,
    %c0_15 = arith.constant 0 : index
    %c0_16 = arith.constant 0 : index
    %c0_17 = arith.constant 0 : index
    %c0_18 = arith.constant 0 : index
    %c0_19 = arith.constant 0 : index
    %c0_20 = arith.constant 0 : index
    %13 = vector.load %arg4[%c0_15, %c0_16, %c0_17, %c0_18, %c0_19, %c0_20] : memref<1x8x1x1x1x128xf32, #tpu.memory_space<vmem>>, vector<1x8x1x1x1x128xf32>
    %14 = vector.shape_cast %13 : vector<1x8x1x1x1x128xf32> to vector<8x128xf32>
    %c64_i32_21 = arith.constant 64 : i32
    %15 = tpu.dynamic_rotate %14 by %c64_i32_21 dim 1 : vector<8x128xf32>, i32 -> vector<8x128xf32>
    %16 = arith.mulf %14, %1 : vector<8x128xf32>
    %17 = arith.mulf %15, %3 : vector<8x128xf32>
    %18 = arith.addf %16, %17 : vector<8x128xf32>
    %c0_22 = arith.constant 0 : index
    %c0_23 = arith.constant 0 : index
    %c0_24 = arith.constant 0 : index
    %c0_25 = arith.constant 0 : index
    %19 = vector.load %arg8[%c0_22, %c0_23, %c0_24, %c0_25] : memref<1x1x8x128xf32, #tpu.memory_space<vmem>>, vector<1x1x8x128xf32>
    %20 = vector.shape_cast %19 : vector<1x1x8x128xf32> to vector<8x128xf32>
    %21 = vector.shape_cast %18 : vector<8x128xf32> to vector<1x1x8x128xf32>
    tpu.vector_store %arg8[%c0_22, %c0_23, %c0_24, %c0_25], %21 {strides = array<i32>} : memref<1x1x8x128xf32, #tpu.memory_space<vmem>>, vector<1x1x8x128xf32>,
    return
  }
  func.func @transform_0(%arg0: i32, %arg1: i32, %arg2: i32) -> (i32, i32, i32, i32, i32, i32) {
    %c0_i32 = arith.constant 0 : i32
    %c0_i32_0 = arith.constant 0 : i32
    %c0_i32_1 = arith.constant 0 : i32
    %c0_i32_2 = arith.constant 0 : i32
    return %arg0, %arg1, %c0_i32, %arg2, %c0_i32_0, %c0_i32_1 : i32, i32, i32, i32, i32, i32
  }
  func.func @transform_1(%arg0: i32, %arg1: i32, %arg2: i32) -> (i32, i32, i32, i32, i32, i32) {
    %c1_i32 = arith.constant 1 : i32
    %c0_i32 = arith.constant 0 : i32
    %c0_i32_0 = arith.constant 0 : i32
    %c0_i32_1 = arith.constant 0 : i32
    return %arg0, %arg1, %c1_i32, %arg2, %c0_i32, %c0_i32_0 : i32, i32, i32, i32, i32, i32
  }
  func.func @transform_2(%arg0: i32, %arg1: i32, %arg2: i32) -> (i32, i32, i32) {
    %c0_i32 = arith.constant 0 : i32
    %c0_i32_0 = arith.constant 0 : i32
    return %arg0, %arg1, %c0_i32 : i32, i32, i32
  }
  func.func @transform_3(%arg0: i32, %arg1: i32, %arg2: i32) -> (i32, i32, i32) {
    %c0_i32 = arith.constant 0 : i32
    %c0_i32_0 = arith.constant 0 : i32
    return %arg0, %arg1, %c0_i32 : i32, i32, i32
  }
  func.func @transform_4(%arg0: i32, %arg1: i32, %arg2: i32) -> (i32, i32, i32, i32) {
    %c0_i32 = arith.constant 0 : i32
    %c0_i32_0 = arith.constant 0 : i32
    return %arg0, %arg2, %arg1, %c0_i32 : i32, i32, i32, i32
  }
  func.func @transform_5(%arg0: i32, %arg1: i32, %arg2: i32) -> (i32, i32, i32, i32) {
    %c0_i32 = arith.constant 0 : i32
    %c0_i32_0 = arith.constant 0 : i32
    return %arg0, %arg2, %arg1, %c0_i32 : i32, i32, i32, i32
  }
}

</mosaic_0001>

<llo_original>
// kernel: tpu_custom_call.1
$region0: #{tpu_custom_call.1}
  #allocation0 [shape = 'u32[]', space=smem, size = 0x4, offset = 0x4, fixed_abs, tag = 'smem constant byte address 0x4 - core index']
  #allocation1 [shape = 'u32[144,128]{1,0:T(1,128)}', space=vmem, size = 0x12000, scoped, tag = 'internal scratch']
  %s0 = inlined_call_operand.hbm [shape: f32[2,8,3,4,1,128], index: 0, kind: input, shape index: {}]
  %s1 = inlined_call_operand.hbm [shape: f32[2,8,3,4,1,128], index: 1, kind: input, shape index: {}]
  %s2 = inlined_call_operand.hbm [shape: f32[2,8,128], index: 2, kind: input, shape index: {}]
  %s3 = inlined_call_operand.hbm [shape: f32[2,8,128], index: 3, kind: input, shape index: {}]
  %s4 = inlined_call_operand.hbm [shape: f32[2,4,8,128], index: 4, kind: output, shape index: {0}]
  %s5 = inlined_call_operand.hbm [shape: f32[2,4,8,128], index: 5, kind: output, shape index: {1}]
  %6 = xla_tuple %s4, %s5
  %s7 = sld [smem:[#allocation0]]
  $region73: #{tpu_custom_call.1} parent=0
    _
  %s9 = ssub.s32 1, %s7
  %s10 = scalar_select 0, %s9, %s7
  $region1: #{tpu_custom_call.1} parent=0
    #allocation2 [shape = 'u8[8192]{0}', space=vmem, size = 0x2000, scoped, tag = 'input window, operand 0']
    #allocation3 [shape = 's32[2]{0}', space=sflag, size = 0x8, scoped, tag = 'scoped memory for tpu_custom_call.1']
    #allocation4 [shape = 's32[2]{0}', space=sflag, size = 0x8, scoped, tag = 'scoped memory for tpu_custom_call.1']
    #allocation5 [shape = 'u8[8192]{0}', space=vmem, size = 0x2000, scoped, tag = 'input window, operand 1']
    #allocation6 [shape = 's32[2]{0}', space=sflag, size = 0x8, scoped, tag = 'scoped memory for tpu_custom_call.1']
    #allocation7 [shape = 'u8[8192]{0}', space=vmem, size = 0x2000, scoped, tag = 'input window, operand 2']
    #allocation8 [shape = 'u8[8192]{0}', space=vmem, size = 0x2000, scoped, tag = 'input window, operand 3']
    #allocation9 [shape = 's32[2]{0}', space=sflag, size = 0x8, scoped, tag = 'scoped memory for tpu_custom_call.1']
    #allocation10 [shape = 'u8[8192]{0}', space=vmem, size = 0x2000, scoped, tag = 'output window, operand 0']
    #allocation11 [shape = 'u8[8192]{0}', space=vmem, size = 0x2000, scoped, tag = 'output window, operand 1']
    #allocation12 [shape = 's32[2]{0}', space=sflag, size = 0x8, scoped, tag = 'scoped memory for tpu_custom_call.1']
    %11 = vsyncpa [#allocation3], 0
    %s12 = scalar_lea.sflag [#allocation3], 1
    %13 = vsyncpa %s12, 0
    %14 = vsyncpa [#allocation6], 0
    %s15 = scalar_lea.sflag [#allocation6], 1
    %16 = vsyncpa %s15, 0
    %17 = vsyncpa [#allocation9], 0
    %s18 = scalar_lea.sflag [#allocation9], 1
    %19 = vsyncpa %s18, 0
    %20 = vsyncpa [#allocation4], 0
    %s21 = scalar_lea.sflag [#allocation4], 1
    %22 = vsyncpa %s21, 0
    %23 = vsyncpa [#allocation12], 0
    %s24 = scalar_lea.sflag [#allocation12], 1
    %25 = vsyncpa %s24, 0
    loop: start=0, step=1, limit=10
    $region2: #{tpu_custom_call.1} parent=1 // loop_pre_header
      _
    $region3: #{tpu_custom_call.1} parent=1 // loop_header
      %s27 = sphi 0, %s31
      %p28 = scmp.ge.s32.totalorder %s27, 10
      %s34 = sphi 0, %s53
      %s35 = sphi 0, %s49
      %s36 = sphi 0, %s45
      %s37 = sphi 0, %s34
      %s38 = sphi 0, %s35
      %s39 = sphi 0, %s36
      %s40 = sphi 0, %s37
      %s41 = sphi 0, %s38
      %s42 = sphi 0, %s39
      %s60 = sphi 0, %s62
      %s63 = sphi 0, %s60
      %s64 = sphi 0, %s63
      %s80 = sphi 0, %s64
      %s90 = sphi 0, %s92
      %s93 = sphi 0, %s90
      %s94 = sphi 0, %s93
      %s110 = sphi 0, %s94
      %s118 = sphi 0, %s120
      %s121 = sphi 0, %s118
      %s122 = sphi 0, %s121
      %s138 = sphi 0, %s122
      %s146 = sphi 0, %s148
      %s149 = sphi 0, %s146
      %s150 = sphi 0, %s149
      %s166 = sphi 0, %s150
      %s176 = sphi 0, %s178
      %s179 = sphi 0, %s176
      %s180 = sphi 0, %s179
      %s196 = sphi 0, %s180
      %s206 = sphi 0, %s208
      %s209 = sphi 0, %s206
      %s210 = sphi 0, %s209
      %s226 = sphi 0, %s210
    $region4: #{tpu_custom_call.1} parent=1 // loop_header_branch
      %30 = sbr.rel (%p28) target = $region8
    $region5: #{tpu_custom_call.1} parent=1 // loop_body
      %s32 = ssub.s32 %s27, 1
      %s33 = ssub.s32 %s27, 2
      %s43 = sadd.s32 1, %s36
      %p44 = scmp.ge.s32.totalorder %s43, 4
      %s45 = scalar_select %p44, 0, %s43
      %s46 = sadd.s32 1, %s35
      %s47 = scalar_select %p44, %s46, %s35
      %p48 = scmp.ge.s32.totalorder %s47, 1
      %s49 = scalar_select %p48, 0, %s47
      %s50 = sadd.s32 1, %s34
      %s51 = scalar_select %p48, %s50, %s34
      %p52 = scmp.ge.s32.totalorder %s51, 2
      %s53 = scalar_select %p52, 0, %s51
      %s54 = ssub.s32 %s34, %s53
      %s55 = ssub.s32 %s35, %s49
      %s56 = sor.u32 %s54, %s55
      %s57 = ssub.s32 %s36, %s45
      %s58 = sor.u32 %s56, %s57
      %p59 = scmp.eq.s32.totalorder %s58, 0
      %s61 = sadd.s32 %s60, 1
      %s62 = scalar_select %p59, %s60, %s61
      %p65 = pneg %p59
      %p66 = scmp.eq.s32.totalorder %s27, 7
      %p67 = por %p65, %p66
      %p68 = scmp.ne.s32.totalorder %s60, %s63
      %p69 = scmp.eq.s32.totalorder %s27, 0
      %p70 = por %p68, %p69
      %p71 = scmp.ne.s32.totalorder %s60, %s63
      %p72 = scmp.eq.s32.totalorder %s32, 7
      %p73 = por %p71, %p72
      %p74 = scmp.ne.s32.totalorder %s63, %s64
      %p75 = scmp.eq.s32.totalorder %s32, 0
      %p76 = por %p74, %p75
      %p77 = scmp.ne.s32.totalorder %s63, %s64
      %p78 = scmp.eq.s32.totalorder %s33, 7
      %p79 = por %p77, %p78
      %p81 = scmp.ne.s32.totalorder %s64, %s80
      %p82 = scmp.eq.s32.totalorder %s33, 0
      %p83 = por %p81, %p82
      %s84 = ssub.s32 %s34, %s53
      %s85 = ssub.s32 %s35, %s49
      %s86 = sor.u32 %s84, %s85
      %s87 = ssub.s32 %s36, %s45
      %s88 = sor.u32 %s86, %s87
      %p89 = scmp.eq.s32.totalorder %s88, 0
      %s91 = sadd.s32 %s90, 1
      %s92 = scalar_select %p89, %s90, %s91
      %p95 = pneg %p89
      %p96 = scmp.eq.s32.totalorder %s27, 7
      %p97 = por %p95, %p96
      %p98 = scmp.ne.s32.totalorder %s90, %s93
      %p99 = scmp.eq.s32.totalorder %s27, 0
      %p100 = por %p98, %p99
      %p101 = scmp.ne.s32.totalorder %s90, %s93
      %p102 = scmp.eq.s32.totalorder %s32, 7
      %p103 = por %p101, %p102
      %p104 = scmp.ne.s32.totalorder %s93, %s94
      %p105 = scmp.eq.s32.totalorder %s32, 0
      %p106 = por %p104, %p105
      %p107 = scmp.ne.s32.totalorder %s93, %s94
      %p108 = scmp.eq.s32.totalorder %s33, 7
      %p109 = por %p107, %p108
      %p111 = scmp.ne.s32.totalorder %s94, %s110
      %p112 = scmp.eq.s32.totalorder %s33, 0
      %p113 = por %p111, %p112
      %s114 = ssub.s32 %s34, %s53
      %s115 = ssub.s32 %s35, %s49
      %s116 = sor.u32 %s114, %s115
      %p117 = scmp.eq.s32.totalorder %s116, 0
      %s119 = sadd.s32 %s118, 1
      %s120 = scalar_select %p117, %s118, %s119
      %p123 = pneg %p117
      %p124 = scmp.eq.s32.totalorder %s27, 7
      %p125 = por %p123, %p124
      %p126 = scmp.ne.s32.totalorder %s118, %s121
      %p127 = scmp.eq.s32.totalorder %s27, 0
      %p128 = por %p126, %p127
      %p129 = scmp.ne.s32.totalorder %s118, %s121
      %p130 = scmp.eq.s32.totalorder %s32, 7
      %p131 = por %p129, %p130
      %p132 = scmp.ne.s32.totalorder %s121, %s122
      %p133 = scmp.eq.s32.totalorder %s32, 0
      %p134 = por %p132, %p133
      %p135 = scmp.ne.s32.totalorder %s121, %s122
      %p136 = scmp.eq.s32.totalorder %s33, 7
      %p137 = por %p135, %p136
      %p139 = scmp.ne.s32.totalorder %s122, %s138
      %p140 = scmp.eq.s32.totalorder %s33, 0
      %p141 = por %p139, %p140
      %s142 = ssub.s32 %s34, %s53
      %s143 = ssub.s32 %s35, %s49
      %s144 = sor.u32 %s142, %s143
      %p145 = scmp.eq.s32.totalorder %s144, 0
      %s147 = sadd.s32 %s146, 1
      %s148 = scalar_select %p145, %s146, %s147
      %p151 = pneg %p145
      %p152 = scmp.eq.s32.totalorder %s27, 7
      %p153 = por %p151, %p152
      %p154 = scmp.ne.s32.totalorder %s146, %s149
      %p155 = scmp.eq.s32.totalorder %s27, 0
      %p156 = por %p154, %p155
      %p157 = scmp.ne.s32.totalorder %s146, %s149
      %p158 = scmp.eq.s32.totalorder %s32, 7
      %p159 = por %p157, %p158
      %p160 = scmp.ne.s32.totalorder %s149, %s150
      %p161 = scmp.eq.s32.totalorder %s32, 0
      %p162 = por %p160, %p161
      %p163 = scmp.ne.s32.totalorder %s149, %s150
      %p164 = scmp.eq.s32.totalorder %s33, 7
      %p165 = por %p163, %p164
      %p167 = scmp.ne.s32.totalorder %s150, %s166
      %p168 = scmp.eq.s32.totalorder %s33, 0
      %p169 = por %p167, %p168
      %s170 = ssub.s32 %s34, %s53
      %s171 = ssub.s32 %s36, %s45
      %s172 = sor.u32 %s170, %s171
      %s173 = ssub.s32 %s35, %s49
      %s174 = sor.u32 %s172, %s173
      %p175 = scmp.eq.s32.totalorder %s174, 0
      %s177 = sadd.s32 %s176, 1
      %s178 = scalar_select %p175, %s176, %s177
      %p181 = pneg %p175
      %p182 = scmp.eq.s32.totalorder %s27, 7
      %p183 = por %p181, %p182
      %p184 = scmp.ne.s32.totalorder %s176, %s179
      %p185 = scmp.eq.s32.totalorder %s27, 0
      %p186 = por %p184, %p185
      %p187 = scmp.ne.s32.totalorder %s176, %s179
      %p188 = scmp.eq.s32.totalorder %s32, 7
      %p189 = por %p187, %p188
      %p190 = scmp.ne.s32.totalorder %s179, %s180
      %p191 = scmp.eq.s32.totalorder %s32, 0
      %p192 = por %p190, %p191
      %p193 = scmp.ne.s32.totalorder %s179, %s180
      %p194 = scmp.eq.s32.totalorder %s33, 7
      %p195 = por %p193, %p194
      %p197 = scmp.ne.s32.totalorder %s180, %s196
      %p198 = scmp.eq.s32.totalorder %s33, 0
      %p199 = por %p197, %p198
      %s200 = ssub.s32 %s34, %s53
      %s201 = ssub.s32 %s36, %s45
      %s202 = sor.u32 %s200, %s201
      %s203 = ssub.s32 %s35, %s49
      %s204 = sor.u32 %s202, %s203
      %p205 = scmp.eq.s32.totalorder %s204, 0
      %s207 = sadd.s32 %s206, 1
      %s208 = scalar_select %p205, %s206, %s207
      %p211 = pneg %p205
      %p212 = scmp.eq.s32.totalorder %s27, 7
      %p213 = por %p211, %p212
      %p214 = scmp.ne.s32.totalorder %s206, %s209
      %p215 = scmp.eq.s32.totalorder %s27, 0
      %p216 = por %p214, %p215
      %p217 = scmp.ne.s32.totalorder %s206, %s209
      %p218 = scmp.eq.s32.totalorder %s32, 7
      %p219 = por %p217, %p218
      %p220 = scmp.ne.s32.totalorder %s209, %s210
      %p221 = scmp.eq.s32.totalorder %s32, 0
      %p222 = por %p220, %p221
      %p223 = scmp.ne.s32.totalorder %s209, %s210
      %p224 = scmp.eq.s32.totalorder %s33, 7
      %p225 = por %p223, %p224
      %p227 = scmp.ne.s32.totalorder %s210, %s226
      %p228 = scmp.eq.s32.totalorder %s33, 0
      %p229 = por %p227, %p228
      %p230 = scmp.le.s32.totalorder 1, %s27
      %p231 = scmp.lt.s32.totalorder %s27, 9
      %p232 = pnand %p230, %p231
      %p233 = pneg %p232
      // Predicated region
      $region9: #{tpu_custom_call.1} parent=5 // pred_check
        _
      $region10: #{tpu_custom_call.1} parent=5 // pred_check_branch
        %235 = sbr.rel (%p232) target = $region12
      $region11: #{tpu_custom_call.1} parent=5 // pred_region
        %s236 = ssub.s32 %s27, 1
      $region12: #{tpu_custom_call.1} parent=5 // pred_fallthru
        _
      %p237 = scmp.lt.s32.totalorder %s27, 8
      // Predicated region
      $region13: #{tpu_custom_call.1} parent=5 // pred_check
        %p238 = pneg %p237
      $region14: #{tpu_custom_call.1} parent=5 // pred_check_branch
        %240 = sbr.rel (%p238) target = $region16
      $region15: #{tpu_custom_call.1} parent=5 // pred_region
        // Predicated region
        $region17: #{tpu_custom_call.1} parent=15 // pred_check
          %p241 = pneg %p70
        $region18: #{tpu_custom_call.1} parent=15 // pred_check_branch
          %243 = sbr.rel (%p241) target = $region20
        $region19: #{tpu_custom_call.1} parent=15 // pred_region
          %s244 = sand.u32 %s60, 1
          %s245 = scalar_lea.sflag [#allocation3], %s244
          %s246 = sand.u32 %s60, 1
          %s247 = smul.addr %s246, 8
          %s248 = scalar_lea.vmem [#allocation2], %s247
          %s249 = smul.u32 8, %s35
          %s251 = ssub.s32 128, 128
          %252 = vsyncadd %s245, %s251
          %s253 = smul.addr %s249, 12
          %s254 = sadd.s32 %s36, %s253
          %s255 = smul.addr %s34, 96
          %s256 = sadd.s32 %s254, %s255
          %s257 = smul.addr %s256, 16
          %s258 = scalar_lea.hbm %s0, %s257
          %s259 = sshll.u32 %s248, 4
          %s260 = int_to_ptr.vmem [resolvable:$true] %s259
          %265 = dma.hbm_to_vmem [thread:$0]  %s258, 128, %s260, %s245, 192, 16, 1
        $region20: #{tpu_custom_call.1} parent=15 // pred_fallthru
          _
        // Predicated region
        $region21: #{tpu_custom_call.1} parent=15 // pred_check
          %p266 = pneg %p100
        $region22: #{tpu_custom_call.1} parent=15 // pred_check_branch
          %268 = sbr.rel (%p266) target = $region24
        $region23: #{tpu_custom_call.1} parent=15 // pred_region
          %s269 = sand.u32 %s27, 1
          %s270 = scalar_lea.sflag [#allocation6], %s269
          %s271 = sand.u32 %s90, 1
          %s272 = smul.addr %s271, 8
          %s273 = scalar_lea.vmem [#allocation5], %s272
          %s274 = smul.u32 8, %s35
          %s276 = ssub.s32 128, 128
          %277 = vsyncadd %s270, %s276
          %s278 = sadd.s32 %s36, 4
          %s279 = smul.addr %s274, 12
          %s280 = sadd.s32 %s278, %s279
          %s281 = smul.addr %s34, 96
          %s282 = sadd.s32 %s280, %s281
          %s283 = smul.addr %s282, 16
          %s284 = scalar_lea.hbm %s1, %s283
          %s285 = sshll.u32 %s273, 4
          %s286 = int_to_ptr.vmem [resolvable:$true] %s285
          %291 = dma.hbm_to_vmem [thread:$0]  %s284, 128, %s286, %s270, 192, 16, 1
        $region24: #{tpu_custom_call.1} parent=15 // pred_fallthru
          _
        // Predicated region
        $region25: #{tpu_custom_call.1} parent=15 // pred_check
          %p292 = pneg %p128
        $region26: #{tpu_custom_call.1} parent=15 // pred_check_branch
          %294 = sbr.rel (%p292) target = $region28
        $region27: #{tpu_custom_call.1} parent=15 // pred_region
          %s295 = sand.u32 %s27, 1
          %s296 = scalar_lea.sflag [#allocation6], %s295
          %s297 = sand.u32 %s118, 1
          %s298 = smul.addr %s297, 8
          %s299 = scalar_lea.vmem [#allocation7], %s298
          %s301 = ssub.s32 128, 128
          %302 = vsyncadd %s296, %s301
          %s303 = sadd.s32 %s35, %s34
          %s304 = smul.addr %s303, 128
          %s305 = scalar_lea.hbm %s2, %s304
          %s307 = sshll.u32 %s299, 4
          %s308 = int_to_ptr.vmem [resolvable:$true] %s307
          %310 = dma.hbm_to_vmem [thread:$0]  %s305, 128, %s308, %s296
        $region28: #{tpu_custom_call.1} parent=15 // pred_fallthru
          _
        // Predicated region
        $region29: #{tpu_custom_call.1} parent=15 // pred_check
          %p311 = pneg %p156
        $region30: #{tpu_custom_call.1} parent=15 // pred_check_branch
          %313 = sbr.rel (%p311) target = $region32
        $region31: #{tpu_custom_call.1} parent=15 // pred_region
          %s314 = sand.u32 %s146, 1
          %s315 = scalar_lea.sflag [#allocation9], %s314
          %s316 = sand.u32 %s146, 1
          %s317 = smul.addr %s316, 8
          %s318 = scalar_lea.vmem [#allocation8], %s317
          %s320 = ssub.s32 128, 128
          %321 = vsyncadd %s315, %s320
          %s322 = sadd.s32 %s35, %s34
          %s323 = smul.addr %s322, 128
          %s324 = scalar_lea.hbm %s3, %s323
          %s326 = sshll.u32 %s318, 4
          %s327 = int_to_ptr.vmem [resolvable:$true] %s326
          %329 = dma.hbm_to_vmem [thread:$0]  %s324, 128, %s327, %s315
        $region32: #{tpu_custom_call.1} parent=15 // pred_fallthru
          _
      $region16: #{tpu_custom_call.1} parent=5 // pred_fallthru
        _
      %p330 = scmp.le.s32.totalorder 1, %s27
      %p331 = scmp.lt.s32.totalorder %s27, 9
      %p332 = pnand %p330, %p331
      %p333 = pneg %p332
      // Predicated region
      $region33: #{tpu_custom_call.1} parent=5 // pred_check
        _
      $region34: #{tpu_custom_call.1} parent=5 // pred_check_branch
        %335 = sbr.rel (%p332) target = $region36
      $region35: #{tpu_custom_call.1} parent=5 // pred_region
        %s336 = ssub.s32 %s27, 1
        %s337 = sand.u32 %s63, 1
        %s338 = scalar_lea.sflag [#allocation3], %s337
        %s339 = sand.u32 %s63, 1
        %s340 = smul.addr %s339, 8
        %s341 = scalar_lea.vmem [#allocation2], %s340
        // Predicated region
        $region37: #{tpu_custom_call.1} parent=35 // pred_check
          %p342 = pneg %p76
        $region38: #{tpu_custom_call.1} parent=35 // pred_check_branch
          %344 = sbr.rel (%p342) target = $region40
        $region39: #{tpu_custom_call.1} parent=35 // pred_region
          %345 = dma.done %s338, 128
        $region40: #{tpu_custom_call.1} parent=35 // pred_fallthru
          _
        %s346 = sand.u32 %s32, 1
        %s347 = scalar_lea.sflag [#allocation6], %s346
        %s348 = sand.u32 %s93, 1
        %s349 = smul.addr %s348, 8
        %s350 = scalar_lea.vmem [#allocation5], %s349
        // Predicated region
        $region41: #{tpu_custom_call.1} parent=35 // pred_check
          %p351 = pneg %p106
        $region42: #{tpu_custom_call.1} parent=35 // pred_check_branch
          %353 = sbr.rel (%p351) target = $region44
        $region43: #{tpu_custom_call.1} parent=35 // pred_region
          %354 = dma.done %s347, 128
        $region44: #{tpu_custom_call.1} parent=35 // pred_fallthru
          _
        %s355 = sand.u32 %s32, 1
        %s356 = scalar_lea.sflag [#allocation6], %s355
        %s357 = sand.u32 %s121, 1
        %s358 = smul.addr %s357, 8
        %s359 = scalar_lea.vmem [#allocation7], %s358
        // Predicated region
        $region45: #{tpu_custom_call.1} parent=35 // pred_check
          %p360 = pneg %p134
        $region46: #{tpu_custom_call.1} parent=35 // pred_check_branch
          %362 = sbr.rel (%p360) target = $region48
        $region47: #{tpu_custom_call.1} parent=35 // pred_region
          %363 = dma.done %s356, 128
        $region48: #{tpu_custom_call.1} parent=35 // pred_fallthru
          _
        %s364 = sand.u32 %s149, 1
        %s365 = scalar_lea.sflag [#allocation9], %s364
        %s366 = sand.u32 %s149, 1
        %s367 = smul.addr %s366, 8
        %s368 = scalar_lea.vmem [#allocation8], %s367
        // Predicated region
        $region49: #{tpu_custom_call.1} parent=35 // pred_check
          %p369 = pneg %p162
        $region50: #{tpu_custom_call.1} parent=35 // pred_check_branch
          %371 = sbr.rel (%p369) target = $region52
        $region51: #{tpu_custom_call.1} parent=35 // pred_region
          %372 = dma.done %s365, 128
        $region52: #{tpu_custom_call.1} parent=35 // pred_fallthru
          _
        %s373 = sand.u32 %s63, 1
        %s374 = scalar_lea.sflag [#allocation3], %s373
        %s375 = sand.u32 %s63, 1
        %s376 = smul.addr %s375, 8
        %s377 = scalar_lea.vmem [#allocation2], %s376
        %p378 = pneg %p76
        %p379 = pneg %p73
        %s380 = sand.u32 %s32, 1
        %s381 = scalar_lea.sflag [#allocation6], %s380
        %s382 = sand.u32 %s93, 1
        %s383 = smul.addr %s382, 8
        %s384 = scalar_lea.vmem [#allocation5], %s383
        %p385 = pneg %p106
        %p386 = pneg %p103
        %s387 = sand.u32 %s32, 1
        %s388 = scalar_lea.sflag [#allocation6], %s387
        %s389 = sand.u32 %s121, 1
        %s390 = smul.addr %s389, 8
        %s391 = scalar_lea.vmem [#allocation7], %s390
        %p392 = pneg %p134
        %p393 = pneg %p131
        %s394 = sand.u32 %s149, 1
        %s395 = scalar_lea.sflag [#allocation9], %s394
        %s396 = sand.u32 %s149, 1
        %s397 = smul.addr %s396, 8
        %s398 = scalar_lea.vmem [#allocation8], %s397
        %p399 = pneg %p162
        %p400 = pneg %p159
        %p401 = pneg %p192
        %p402 = pneg %p189
        %s403 = sand.u32 %s179, 1
        %s404 = scalar_lea.sflag [#allocation4], %s403
        %s405 = sand.u32 %s179, 1
        %s406 = smul.addr %s405, 8
        %s407 = scalar_lea.vmem [#allocation10], %s406
        %p408 = pneg %p222
        %p409 = pneg %p219
        %s410 = sand.u32 %s209, 1
        %s411 = scalar_lea.sflag [#allocation12], %s410
        %s412 = sand.u32 %s209, 1
        %s413 = smul.addr %s412, 8
        %s414 = scalar_lea.vmem [#allocation11], %s413
        %s415 = smul.u32 8, %s38
        %s416 = smul.u32 8, %s38
        %v417 = vld [vmem:[%s359] sm:$0xff]
        %v418 = vld [vmem:[%s368] sm:$0xff]
        %v419 = vld [vmem:[%s341] sm:$0x1]
        %v420 = vld [vmem:[%s341 + $0x1] sm:$0x1]
        %v421 = vld [vmem:[%s341 + $0x2] sm:$0x1]
        %v422 = vld [vmem:[%s341 + $0x3] sm:$0x1]
        %v423 = vld [vmem:[%s341 + $0x4] sm:$0x1]
        %v424 = vld [vmem:[%s341 + $0x5] sm:$0x1]
        %v425 = vld [vmem:[%s341 + $0x6] sm:$0x1]
        %v426 = vld [vmem:[%s341 + $0x7] sm:$0x1]
        %v435 = vcombine.low %v419, %v420
        %v436 = vcombine.low %v421, %v422
        %v437 = vcombine.low %v423, %v424
        %v438 = vcombine.low %v425, %v426
        %v440 = vunpack.c.l.s4 1966171168
        %v441 = vunpack.c.0.s8 %v440
        %v442 = vlaneseq
        %v443 = vshrl.u32 %v442, 7
        %v444 = vsub.s32 %v441, %v443
        %v445 = vrot.slane %v435, %v444
        %v447 = vunpack.c.l.s4 1966171168
        %v448 = vunpack.c.0.s8 %v447
        %v449 = vlaneseq
        %v450 = vshrl.u32 %v449, 7
        %v451 = vsub.s32 %v448, %v450
        %v452 = vrot.slane %v436, %v451
        %v454 = vunpack.c.l.s4 1966171168
        %v455 = vunpack.c.0.s8 %v454
        %v456 = vlaneseq
        %v457 = vshrl.u32 %v456, 7
        %v458 = vsub.s32 %v455, %v457
        %v459 = vrot.slane %v437, %v458
        %v461 = vunpack.c.l.s4 1966171168
        %v462 = vunpack.c.0.s8 %v461
        %v463 = vlaneseq
        %v464 = vshrl.u32 %v463, 7
        %v465 = vsub.s32 %v462, %v464
        %v466 = vrot.slane %v438, %v465
        %v467 = vcombine.low %v445, %v452
        %v468 = vcombine.low %v459, %v466
        %v470 = vunpack.c.l.s4 1966171168
        %v471 = vunpack.c.0.s8 %v470
        %v472 = vlaneseq
        %v473 = vshrl.u32 %v472, 7
        %v474 = vsub.s32 %v471, %v473
        %v475 = vrot.slane %v467, %v474
        %v477 = vunpack.c.l.s4 1966171168
        %v478 = vunpack.c.0.s8 %v477
        %v479 = vlaneseq
        %v480 = vshrl.u32 %v479, 7
        %v481 = vsub.s32 %v478, %v480
        %v482 = vrot.slane %v468, %v481
        %v483 = vcombine.low %v475, %v482
        %485 = vrot.lane.b32.xlu0 %v483, 64
        %v486 = vpop.permute.xlu0 %485
        %v488 = vcombine.high %v417, %v417
        %v490 = vunpack.c.l.s4 1966171168
        %v491 = vunpack.c.0.s8 %v490
        %v492 = vlaneseq
        %v493 = vshrl.u32 %v492, 7
        %v494 = vsub.s32 %v491, %v493
        %v495 = vrot.slane %v417, %v494
        %v497 = vunpack.c.l.s4 1966171168
        %v498 = vunpack.c.0.s8 %v497
        %v499 = vlaneseq
        %v500 = vshrl.u32 %v499, 7
        %v501 = vsub.s32 %v498, %v500
        %v502 = vrot.slane %v488, %v501
        %v503 = vcombine.high %v495, %v495
        %v504 = vcombine.high %v502, %v502
        %v506 = vunpack.c.l.s4 1966171168
        %v507 = vunpack.c.0.s8 %v506
        %v508 = vlaneseq
        %v509 = vshrl.u32 %v508, 7
        %v510 = vsub.s32 %v507, %v509
        %v511 = vrot.slane %v495, %v510
        %v513 = vunpack.c.l.s4 1966171168
        %v514 = vunpack.c.0.s8 %v513
        %v515 = vlaneseq
        %v516 = vshrl.u32 %v515, 7
        %v517 = vsub.s32 %v514, %v516
        %v518 = vrot.slane %v502, %v517
        %v520 = vunpack.c.l.s4 1966171168
        %v521 = vunpack.c.0.s8 %v520
        %v522 = vlaneseq
        %v523 = vshrl.u32 %v522, 7
        %v524 = vsub.s32 %v521, %v523
        %v525 = vrot.slane %v503, %v524
        %v527 = vunpack.c.l.s4 1966171168
        %v528 = vunpack.c.0.s8 %v527
        %v529 = vlaneseq
        %v530 = vshrl.u32 %v529, 7
        %v531 = vsub.s32 %v528, %v530
        %v532 = vrot.slane %v504, %v531
        %v533 = vcombine.high %v511, %v511
        %v534 = vcombine.high %v518, %v518
        %v535 = vcombine.high %v525, %v525
        %v536 = vcombine.high %v532, %v532
        %v545 = vmul.f32 %v419, %v511
        %v546 = vmul.f32 %v420, %v525
        %v547 = vmul.f32 %v421, %v533
        %v548 = vmul.f32 %v422, %v535
        %v549 = vmul.f32 %v423, %v518
        %v550 = vmul.f32 %v424, %v532
        %v551 = vmul.f32 %v425, %v534
        %v552 = vmul.f32 %v426, %v536
        %v553 = vmul.f32 %v486, %v418
        %v555 = vcombine.high %v553, %v553
        %v557 = vunpack.c.l.s4 1966171168
        %v558 = vunpack.c.0.s8 %v557
        %v559 = vlaneseq
        %v560 = vshrl.u32 %v559, 7
        %v561 = vsub.s32 %v558, %v560
        %v562 = vrot.slane %v553, %v561
        %v564 = vunpack.c.l.s4 1966171168
        %v565 = vunpack.c.0.s8 %v564
        %v566 = vlaneseq
        %v567 = vshrl.u32 %v566, 7
        %v568 = vsub.s32 %v565, %v567
        %v569 = vrot.slane %v555, %v568
        %v570 = vcombine.high %v562, %v562
        %v571 = vcombine.high %v569, %v569
        %v573 = vunpack.c.l.s4 1966171168
        %v574 = vunpack.c.0.s8 %v573
        %v575 = vlaneseq
        %v576 = vshrl.u32 %v575, 7
        %v577 = vsub.s32 %v574, %v576
        %v578 = vrot.slane %v562, %v577
        %v580 = vunpack.c.l.s4 1966171168
        %v581 = vunpack.c.0.s8 %v580
        %v582 = vlaneseq
        %v583 = vshrl.u32 %v582, 7
        %v584 = vsub.s32 %v581, %v583
        %v585 = vrot.slane %v569, %v584
        %v587 = vunpack.c.l.s4 1966171168
        %v588 = vunpack.c.0.s8 %v587
        %v589 = vlaneseq
        %v590 = vshrl.u32 %v589, 7
        %v591 = vsub.s32 %v588, %v590
        %v592 = vrot.slane %v570, %v591
        %v594 = vunpack.c.l.s4 1966171168
        %v595 = vunpack.c.0.s8 %v594
        %v596 = vlaneseq
        %v597 = vshrl.u32 %v596, 7
        %v598 = vsub.s32 %v595, %v597
        %v599 = vrot.slane %v571, %v598
        %v600 = vcombine.high %v578, %v578
        %v601 = vcombine.high %v585, %v585
        %v602 = vcombine.high %v592, %v592
        %v603 = vcombine.high %v599, %v599
        %v612 = vadd.f32 %v545, %v578
        %v613 = vadd.f32 %v546, %v592
        %v614 = vadd.f32 %v547, %v600
        %v615 = vadd.f32 %v548, %v602
        %v616 = vadd.f32 %v549, %v585
        %v617 = vadd.f32 %v550, %v599
        %v618 = vadd.f32 %v551, %v601
        %v619 = vadd.f32 %v552, %v603
        %v628 = vcombine.low %v612, %v613
        %v629 = vcombine.low %v614, %v615
        %v630 = vcombine.low %v616, %v617
        %v631 = vcombine.low %v618, %v619
        %v633 = vunpack.c.l.s4 1966171168
        %v634 = vunpack.c.0.s8 %v633
        %v635 = vlaneseq
        %v636 = vshrl.u32 %v635, 7
        %v637 = vsub.s32 %v634, %v636
        %v638 = vrot.slane %v628, %v637
        %v640 = vunpack.c.l.s4 1966171168
        %v641 = vunpack.c.0.s8 %v640
        %v642 = vlaneseq
        %v643 = vshrl.u32 %v642, 7
        %v644 = vsub.s32 %v641, %v643
        %v645 = vrot.slane %v629, %v644
        %v647 = vunpack.c.l.s4 1966171168
        %v648 = vunpack.c.0.s8 %v647
        %v649 = vlaneseq
        %v650 = vshrl.u32 %v649, 7
        %v651 = vsub.s32 %v648, %v650
        %v652 = vrot.slane %v630, %v651
        %v654 = vunpack.c.l.s4 1966171168
        %v655 = vunpack.c.0.s8 %v654
        %v656 = vlaneseq
        %v657 = vshrl.u32 %v656, 7
        %v658 = vsub.s32 %v655, %v657
        %v659 = vrot.slane %v631, %v658
        %v660 = vcombine.low %v638, %v645
        %v661 = vcombine.low %v652, %v659
        %v663 = vunpack.c.l.s4 1966171168
        %v664 = vunpack.c.0.s8 %v663
        %v665 = vlaneseq
        %v666 = vshrl.u32 %v665, 7
        %v667 = vsub.s32 %v664, %v666
        %v668 = vrot.slane %v660, %v667
        %v670 = vunpack.c.l.s4 1966171168
        %v671 = vunpack.c.0.s8 %v670
        %v672 = vlaneseq
        %v673 = vshrl.u32 %v672, 7
        %v674 = vsub.s32 %v671, %v673
        %v675 = vrot.slane %v661, %v674
        %v676 = vcombine.low %v668, %v675
        %678 = vst [vmem:[%s407] sm:$0xff] %v676
        %v679 = vld [vmem:[%s350] sm:$0x1]
        %v680 = vld [vmem:[%s350 + $0x1] sm:$0x1]
        %v681 = vld [vmem:[%s350 + $0x2] sm:$0x1]
        %v682 = vld [vmem:[%s350 + $0x3] sm:$0x1]
        %v683 = vld [vmem:[%s350 + $0x4] sm:$0x1]
        %v684 = vld [vmem:[%s350 + $0x5] sm:$0x1]
        %v685 = vld [vmem:[%s350 + $0x6] sm:$0x1]
        %v686 = vld [vmem:[%s350 + $0x7] sm:$0x1]
        %v695 = vcombine.low %v679, %v680
        %v696 = vcombine.low %v681, %v682
        %v697 = vcombine.low %v683, %v684
        %v698 = vcombine.low %v685, %v686
        %v700 = vunpack.c.l.s4 1966171168
        %v701 = vunpack.c.0.s8 %v700
        %v702 = vlaneseq
        %v703 = vshrl.u32 %v702, 7
        %v704 = vsub.s32 %v701, %v703
        %v705 = vrot.slane %v695, %v704
        %v707 = vunpack.c.l.s4 1966171168
        %v708 = vunpack.c.0.s8 %v707
        %v709 = vlaneseq
        %v710 = vshrl.u32 %v709, 7
        %v711 = vsub.s32 %v708, %v710
        %v712 = vrot.slane %v696, %v711
        %v714 = vunpack.c.l.s4 1966171168
        %v715 = vunpack.c.0.s8 %v714
        %v716 = vlaneseq
        %v717 = vshrl.u32 %v716, 7
        %v718 = vsub.s32 %v715, %v717
        %v719 = vrot.slane %v697, %v718
        %v721 = vunpack.c.l.s4 1966171168
        %v722 = vunpack.c.0.s8 %v721
        %v723 = vlaneseq
        %v724 = vshrl.u32 %v723, 7
        %v725 = vsub.s32 %v722, %v724
        %v726 = vrot.slane %v698, %v725
        %v727 = vcombine.low %v705, %v712
        %v728 = vcombine.low %v719, %v726
        %v730 = vunpack.c.l.s4 1966171168
        %v731 = vunpack.c.0.s8 %v730
        %v732 = vlaneseq
        %v733 = vshrl.u32 %v732, 7
        %v734 = vsub.s32 %v731, %v733
        %v735 = vrot.slane %v727, %v734
        %v737 = vunpack.c.l.s4 1966171168
        %v738 = vunpack.c.0.s8 %v737
        %v739 = vlaneseq
        %v740 = vshrl.u32 %v739, 7
        %v741 = vsub.s32 %v738, %v740
        %v742 = vrot.slane %v728, %v741
        %v743 = vcombine.low %v735, %v742
        %745 = vrot.lane.b32.xlu0 %v743, 64
        %v746 = vpop.permute.xlu0 %745
        %v747 = vmul.f32 %v679, %v511
        %v748 = vmul.f32 %v680, %v525
        %v749 = vmul.f32 %v681, %v533
        %v750 = vmul.f32 %v682, %v535
        %v751 = vmul.f32 %v683, %v518
        %v752 = vmul.f32 %v684, %v532
        %v753 = vmul.f32 %v685, %v534
        %v754 = vmul.f32 %v686, %v536
        %v755 = vmul.f32 %v746, %v418
        %v757 = vcombine.high %v755, %v755
        %v759 = vunpack.c.l.s4 1966171168
        %v760 = vunpack.c.0.s8 %v759
        %v761 = vlaneseq
        %v762 = vshrl.u32 %v761, 7
        %v763 = vsub.s32 %v760, %v762
        %v764 = vrot.slane %v755, %v763
        %v766 = vunpack.c.l.s4 1966171168
        %v767 = vunpack.c.0.s8 %v766
        %v768 = vlaneseq
        %v769 = vshrl.u32 %v768, 7
        %v770 = vsub.s32 %v767, %v769
        %v771 = vrot.slane %v757, %v770
        %v772 = vcombine.high %v764, %v764
        %v773 = vcombine.high %v771, %v771
        %v775 = vunpack.c.l.s4 1966171168
        %v776 = vunpack.c.0.s8 %v775
        %v777 = vlaneseq
        %v778 = vshrl.u32 %v777, 7
        %v779 = vsub.s32 %v776, %v778
        %v780 = vrot.slane %v764, %v779
        %v782 = vunpack.c.l.s4 1966171168
        %v783 = vunpack.c.0.s8 %v782
        %v784 = vlaneseq
        %v785 = vshrl.u32 %v784, 7
        %v786 = vsub.s32 %v783, %v785
        %v787 = vrot.slane %v771, %v786
        %v789 = vunpack.c.l.s4 1966171168
        %v790 = vunpack.c.0.s8 %v789
        %v791 = vlaneseq
        %v792 = vshrl.u32 %v791, 7
        %v793 = vsub.s32 %v790, %v792
        %v794 = vrot.slane %v772, %v793
        %v796 = vunpack.c.l.s4 1966171168
        %v797 = vunpack.c.0.s8 %v796
        %v798 = vlaneseq
        %v799 = vshrl.u32 %v798, 7
        %v800 = vsub.s32 %v797, %v799
        %v801 = vrot.slane %v773, %v800
        %v802 = vcombine.high %v780, %v780
        %v803 = vcombine.high %v787, %v787
        %v804 = vcombine.high %v794, %v794
        %v805 = vcombine.high %v801, %v801
        %v814 = vadd.f32 %v747, %v780
        %v815 = vadd.f32 %v748, %v794
        %v816 = vadd.f32 %v749, %v802
        %v817 = vadd.f32 %v750, %v804
        %v818 = vadd.f32 %v751, %v787
        %v819 = vadd.f32 %v752, %v801
        %v820 = vadd.f32 %v753, %v803
        %v821 = vadd.f32 %v754, %v805
        %v830 = vcombine.low %v814, %v815
        %v831 = vcombine.low %v816, %v817
        %v832 = vcombine.low %v818, %v819
        %v833 = vcombine.low %v820, %v821
        %v835 = vunpack.c.l.s4 1966171168
        %v836 = vunpack.c.0.s8 %v835
        %v837 = vlaneseq
        %v838 = vshrl.u32 %v837, 7
        %v839 = vsub.s32 %v836, %v838
        %v840 = vrot.slane %v830, %v839
        %v842 = vunpack.c.l.s4 1966171168
        %v843 = vunpack.c.0.s8 %v842
        %v844 = vlaneseq
        %v845 = vshrl.u32 %v844, 7
        %v846 = vsub.s32 %v843, %v845
        %v847 = vrot.slane %v831, %v846
        %v849 = vunpack.c.l.s4 1966171168
        %v850 = vunpack.c.0.s8 %v849
        %v851 = vlaneseq
        %v852 = vshrl.u32 %v851, 7
        %v853 = vsub.s32 %v850, %v852
        %v854 = vrot.slane %v832, %v853
        %v856 = vunpack.c.l.s4 1966171168
        %v857 = vunpack.c.0.s8 %v856
        %v858 = vlaneseq
        %v859 = vshrl.u32 %v858, 7
        %v860 = vsub.s32 %v857, %v859
        %v861 = vrot.slane %v833, %v860
        %v862 = vcombine.low %v840, %v847
        %v863 = vcombine.low %v854, %v861
        %v865 = vunpack.c.l.s4 1966171168
        %v866 = vunpack.c.0.s8 %v865
        %v867 = vlaneseq
        %v868 = vshrl.u32 %v867, 7
        %v869 = vsub.s32 %v866, %v868
        %v870 = vrot.slane %v862, %v869
        %v872 = vunpack.c.l.s4 1966171168
        %v873 = vunpack.c.0.s8 %v872
        %v874 = vlaneseq
        %v875 = vshrl.u32 %v874, 7
        %v876 = vsub.s32 %v873, %v875
        %v877 = vrot.slane %v863, %v876
        %v878 = vcombine.low %v870, %v877
        %880 = vst [vmem:[%s414] sm:$0xff] %v878
        %s881 = sand.u32 %s179, 1
        %s882 = scalar_lea.sflag [#allocation4], %s881
        %s883 = sand.u32 %s179, 1
        %s884 = smul.addr %s883, 8
        %s885 = scalar_lea.vmem [#allocation10], %s884
        %s886 = sand.u32 %s209, 1
        %s887 = scalar_lea.sflag [#allocation12], %s886
        %s888 = sand.u32 %s209, 1
        %s889 = smul.addr %s888, 8
        %s890 = scalar_lea.vmem [#allocation11], %s889
        // Predicated region
        $region53: #{tpu_custom_call.1} parent=35 // pred_check
          %p891 = pneg %p189
        $region54: #{tpu_custom_call.1} parent=35 // pred_check_branch
          %893 = sbr.rel (%p891) target = $region56
        $region55: #{tpu_custom_call.1} parent=35 // pred_region
          %s895 = ssub.s32 128, 128
          %896 = vsyncadd %s882, %s895
          %s897 = sadd.s32 %s38, %s39
          %s898 = smul.addr %s37, 4
          %s899 = sadd.s32 %s897, %s898
          %s900 = smul.addr %s899, 128
          %s901 = scalar_lea.hbm %s4, %s900
          %s903 = sshll.u32 %s885, 4
          %s904 = int_to_ptr.vmem [resolvable:$true] %s903
          %906 = dma.vmem_to_hbm [thread:$0]  %s904, 128, %s901, %s882
        $region56: #{tpu_custom_call.1} parent=35 // pred_fallthru
          _
        // Predicated region
        $region57: #{tpu_custom_call.1} parent=35 // pred_check
          %p907 = pneg %p219
        $region58: #{tpu_custom_call.1} parent=35 // pred_check_branch
          %909 = sbr.rel (%p907) target = $region60
        $region59: #{tpu_custom_call.1} parent=35 // pred_region
          %s911 = ssub.s32 128, 128
          %912 = vsyncadd %s887, %s911
          %s913 = sadd.s32 %s38, %s39
          %s914 = smul.addr %s37, 4
          %s915 = sadd.s32 %s913, %s914
          %s916 = smul.addr %s915, 128
          %s917 = scalar_lea.hbm %s5, %s916
          %s919 = sshll.u32 %s890, 4
          %s920 = int_to_ptr.vmem [resolvable:$true] %s919
          %922 = dma.vmem_to_hbm [thread:$0]  %s920, 128, %s917, %s887
        $region60: #{tpu_custom_call.1} parent=35 // pred_fallthru
          _
      $region36: #{tpu_custom_call.1} parent=5 // pred_fallthru
        _
      %p923 = scmp.le.s32.totalorder 2, %s27
      // Predicated region
      $region61: #{tpu_custom_call.1} parent=5 // pred_check
        %p924 = pneg %p923
      $region62: #{tpu_custom_call.1} parent=5 // pred_check_branch
        %926 = sbr.rel (%p924) target = $region64
      $region63: #{tpu_custom_call.1} parent=5 // pred_region
        %s927 = ssub.s32 %s27, 2
        // Predicated region
        $region65: #{tpu_custom_call.1} parent=63 // pred_check
          %p928 = pneg %p195
        $region66: #{tpu_custom_call.1} parent=63 // pred_check_branch
          %930 = sbr.rel (%p928) target = $region68
        $region67: #{tpu_custom_call.1} parent=63 // pred_region
          %s931 = sand.u32 %s180, 1
          %s932 = scalar_lea.sflag [#allocation4], %s931
          %s933 = sand.u32 %s180, 1
          %s934 = smul.addr %s933, 8
          %s935 = scalar_lea.vmem [#allocation10], %s934
          %936 = dma.done %s932, 128
        $region68: #{tpu_custom_call.1} parent=63 // pred_fallthru
          _
        // Predicated region
        $region69: #{tpu_custom_call.1} parent=63 // pred_check
          %p937 = pneg %p225
        $region70: #{tpu_custom_call.1} parent=63 // pred_check_branch
          %939 = sbr.rel (%p937) target = $region72
        $region71: #{tpu_custom_call.1} parent=63 // pred_region
          %s940 = sand.u32 %s210, 1
          %s941 = scalar_lea.sflag [#allocation12], %s940
          %s942 = sand.u32 %s210, 1
          %s943 = smul.addr %s942, 8
          %s944 = scalar_lea.vmem [#allocation11], %s943
          %945 = dma.done %s941, 128
        $region72: #{tpu_custom_call.1} parent=63 // pred_fallthru
          _
      $region64: #{tpu_custom_call.1} parent=5 // pred_fallthru
        _
    $region6: #{tpu_custom_call.1} parent=1 // loop_footer
      %s31 = sadd.s32 1, %s27
    $region7: #{tpu_custom_call.1} parent=1 // loop_footer_branch
      %26 = sbr.rel target = $region3
    $region8: #{tpu_custom_call.1} parent=1 // loop_exit
      _
    %946 = vsyncpa [#allocation3], 1
    %s947 = scalar_lea.sflag [#allocation3], 1
    %948 = vsyncpa %s947, 1
    %949 = vsyncpa [#allocation6], 1
    %s950 = scalar_lea.sflag [#allocation6], 1
    %951 = vsyncpa %s950, 1
    %952 = vsyncpa [#allocation9], 1
    %s953 = scalar_lea.sflag [#allocation9], 1
    %954 = vsyncpa %s953, 1
    %955 = vsyncpa [#allocation4], 1
    %s956 = scalar_lea.sflag [#allocation4], 1
    %957 = vsyncpa %s956, 1
    %958 = vsyncpa [#allocation12], 1
    %s959 = scalar_lea.sflag [#allocation12], 1
    %960 = vsyncpa %s959, 1

</llo_original>
